<compile_context>
chip_gen: v6e
topology: v6e:2x2x1
jax: 0.10.0
libtpu: 0.0.40
codegen_flags: <defaults>
</compile_context>

<pallas_src>
import math
from functools import partial

import jax
import jax.numpy as jnp
from jax.experimental import pallas as pl
from jax.experimental.pallas import tpu as pltpu

NEG_SLOPE = 0.2
LN_EPS = 1e-5
BN_EPS = 1e-5
MASK_NEG = 1e30


# ----------------------------------------------------------------------------
# small in-kernel math helpers
# ----------------------------------------------------------------------------
def _erf(x):
    # float32-accurate erf (Abramowitz & Stegun 7.1.26, |err| < 1.5e-7); exact erf has
    # no guaranteed Mosaic lowering.
    a1, a2, a3, a4, a5 = 0.254829592, -0.284496736, 1.421413741, -1.453152027, 1.061405429
    p = 0.3275911
    s = jnp.where(x >= 0.0, 1.0, -1.0)
    ax = jnp.abs(x)
    t = 1.0 / (1.0 + p * ax)
    poly = ((((a5 * t + a4) * t + a3) * t + a2) * t + a1) * t
    return s * (1.0 - poly * jnp.exp(-ax * ax))


def _gelu(y):
    return 0.5 * y * (1.0 + _erf(y * 0.7071067811865476))


def _leaky(x, slope):
    return jnp.where(x >= 0.0, x, slope * x)


# ----------------------------------------------------------------------------
# Pallas kernels
# ----------------------------------------------------------------------------
def common_embed_kernel(xv_ref, sv_ref, hv_ref, wv_ref, bv_ref,
                        xt_ref, st_ref, ht_ref, wt_ref, bt_ref,
                        ov_ref, ot_ref):
    """CommonEmbedding: eval-BatchNorm1d (pre-folded affine) -> Linear -> GELU for both
    the video and the tag branch, fused into one launch."""
    xv = xv_ref[...] * sv_ref[...] + hv_ref[...]
    yv = jnp.dot(xv, wv_ref[...], preferred_element_type=jnp.float32) + bv_ref[...]
    ov_ref[...] = _gelu(yv)

    xt = xt_ref[...] * st_ref[...] + ht_ref[...]
    yt = jnp.dot(xt, wt_ref[...], preferred_element_type=jnp.float32) + bt_ref[...]
    ot_ref[...] = _gelu(yt)


def hgn_layer_kernel(*refs, num_types, rel_idx, num_heads, d_k, neg_slope, use_norm):
    """Fused SimpleHGNLayer.forward for one layer.

    Static config (closed over):
      num_types : number of (dst) node types T
      rel_idx   : tuple of (src_type_idx, dst_type_idx, e_id) per relation

    Refs (in order):
      h[t]            [N_t, D_in]   input node features per node type
      mask[r]         [Nd_r, Ns_r]  dense {0,1} adjacency per relation (dst x src)
      fc_w            [D_in, D]     fc weight (transposed vs torch)
      fc_edge_w       [D, D]
      edge_emb        [R, D]
      attn_l_hd       [H, D]        head-block rows of attn_l
      attn_r_dh       [D, H]        head-block cols of attn_r
      attn_e_dh       [D, H]
      ln_gamma,ln_beta[1, D]
    Outputs:
      h0[t]           [N_t, D]      fc-projected features (reference mutates h in place)
      new[t]          [N_t, D]      layer output per node type
    """
    T, R = num_types, len(rel_idx)
    h_refs = refs[:T]
    mask_refs = refs[T:T + R]
    (fc_w_ref, fce_w_ref, eemb_ref, al_hd_ref, ar_dh_ref, ae_dh_ref,
     g_ref, b_ref) = refs[T + R:T + R + 8]
    h0_refs = refs[T + R + 8:T + R + 8 + T]
    new_refs = refs[T + R + 8 + T:]

    # ---- fc projection of every node type (stays in VMEM/vregs) -------------
    fc_w = fc_w_ref[...]
    h = []
    for i in range(T):
        hi = jnp.dot(h_refs[i][...], fc_w, preferred_element_type=jnp.float32)
        h0_refs[i][...] = hi
        h.append(hi)

    # ---- fc_edge on the relation embedding table ----------------------------
    eemb = jnp.dot(eemb_ref[...], fce_w_ref[...], preferred_element_type=jnp.float32)

    # ---- per-node attention terms for ALL heads at once (hoisted) -----------
    al_hd = al_hd_ref[...]          # [H, D]
    ar_dh = ar_dh_ref[...]          # [D, H]
    ae_dh = ae_dh_ref[...]          # [D, H]

    src_ids = sorted({s for s, _, _ in rel_idx})
    # el with src on the LANE axis: one small transpose per src ntype (not per head/rel).
    el_t = {s: jnp.dot(al_hd, h[s].T, preferred_element_type=jnp.float32)
            for s in src_ids}                                          # [H, Ns]
    er = [jnp.dot(h[i], ar_dh, preferred_element_type=jnp.float32)
          for i in range(T)]                                           # [N_i, H]
    ee = jnp.dot(eemb, ae_dh, preferred_element_type=jnp.float32)      # [R, H]

    incoming = {}
    for r_pos, (s, d, e) in enumerate(rel_idx):
        incoming.setdefault(d, []).append((r_pos, s, e))

    # ---- per dst node type: joint edge softmax + aggregation + residual + LN -
    for d in range(T):
        rels = incoming[d]
        h_d = h[d]

        deg = None
        bias = {}
        for (r_pos, s, e) in rels:
            m = mask_refs[r_pos][...]
            bias[r_pos] = (m - 1.0) * MASK_NEG          # 0 where edge, -1e30 where not
            dsum = jnp.sum(m, axis=-1, keepdims=True)
            deg = dsum if deg is None else deg + dsum
        has_edge = deg > 0.0                            # [Nd, 1]

        head_out = []
        for hh in range(num_heads):
            lo, hi = hh * d_k, (hh + 1) * d_k
            er_col = er[d][:, hh:hh + 1]                # [Nd, 1]

            blocks = []
            for (r_pos, s, e) in rels:
                lrow = el_t[s][hh:hh + 1, :]            # [1, Ns]
                lcol = er_col + ee[e:e + 1, hh:hh + 1]  # [Nd, 1]
                blocks.append(_leaky(lrow + lcol, neg_slope) + bias[r_pos])

            mx = jnp.max(blocks[0], axis=-1, keepdims=True)
            for blk in blocks[1:]:
                mx = jnp.maximum(mx, jnp.max(blk, axis=-1, keepdims=True))

            denom, t_h = None, None
            for blk, (r_pos, s, e) in zip(blocks, rels):
                ex = jnp.exp(blk - mx)                  # masked entries underflow to 0
                dsum = jnp.sum(ex, axis=-1, keepdims=True)
                agg = jnp.dot(ex, h[s][:, lo:hi], preferred_element_type=jnp.float32)
                denom = dsum if denom is None else denom + dsum
                t_h = agg if t_h is None else t_h + agg

            inv = pl.reciprocal(denom + 1e-30, approx=True)   # EUP, not VALU
            head_out.append(t_h * inv)

        if num_heads == 1:
            t = head_out[0]
        else:
            # stage per-head slices directly into the output ref (no lane concat)
            for hh in range(num_heads):
                new_refs[d][:, hh * d_k:(hh + 1) * d_k] = head_out[hh]
            t = new_refs[d][...]

        # dst nodes with no incoming edges receive t = 0 (matches DGL sum-reduce)
        t = jnp.where(has_edge, t, 0.0)
        trans = _leaky(t + h_d, neg_slope)
        if use_norm:
            mu = jnp.mean(trans, axis=-1, keepdims=True)
            var = jnp.mean((trans - mu) ** 2, axis=-1, keepdims=True)
            trans = (trans - mu) * jax.lax.rsqrt(var + LN_EPS) * g_ref[...] + b_ref[...]
        new_refs[d][...] = trans


def l2_normalize_kernel(x_ref, o_ref):
    """F.normalize(x): x / max(||x||_2, 1e-12) per row."""
    x = x_ref[...]
    n = jnp.sqrt(jnp.sum(x * x, axis=-1, keepdims=True))
    o_ref[...] = x * pl.reciprocal(jnp.maximum(n, 1e-12), approx=False)


# ----------------------------------------------------------------------------
# pallas_call wrapper: arrays here are tiny, so every ref is a single full-array
# VMEM block (block_shape == array shape), grid=(1,).
# ----------------------------------------------------------------------------
def _full_spec(shape):
    n = len(shape)
    return pl.BlockSpec(shape, lambda i, n=n: (0,) * n)


def _pcall(kernel_fn, out_shapes, arrays):
    out_shape = tuple(jax.ShapeDtypeStruct(s, jnp.float32) for s in out_shapes)
    return pl.pallas_call(
        kernel_fn,
        out_shape=out_shape,
        grid=(1,),
        in_specs=[_full_spec(a.shape) for a in arrays],
        out_specs=tuple(_full_spec(s) for s in out_shapes),
        compiler_params=pltpu.CompilerParams(dimension_semantics=("arbitrary",)),
    )(*arrays)


# ----------------------------------------------------------------------------
# model pieces (JAX glue mirroring the PyTorch modules)
# ----------------------------------------------------------------------------
def common_embedding(params, video_feat, tag_feat, tag_nids):
    ce = params["common"]
    # Embedding lookup kept as JAX glue (gather over the tag embedding table).
    tag_feat = tag_feat + jnp.take(ce["tag_embed"], tag_nids, axis=0)
    hid = ce["video_w"].shape[1]
    ov, ot = _pcall(
        common_embed_kernel,
        ((video_feat.shape[0], hid), (tag_feat.shape[0], hid)),
        [video_feat, ce["video_scale"], ce["video_shift"], ce["video_w"], ce["video_b"],
         tag_feat, ce["tag_scale"], ce["tag_shift"], ce["tag_w"], ce["tag_b"]])
    return {"video": ov, "tag": ot}


def simple_hgn_layer(lp, relations, etypes, h, masks, num_heads, d_k, use_norm):
    # Ordered dst node types (reference: mfg.dsttypes); in TagSimpleHGN graphs every
    # node type appearing in `relations` is also a dst type.
    dst_order = []
    for _, _, dt in relations:
        if dt not in dst_order:
            dst_order.append(dt)
    nt_index = {nt: i for i, nt in enumerate(dst_order)}
    for st, _, _ in relations:
        if st not in nt_index:
            # TODO(synk): src-only node types (never a dst) keep un-projected feats in the
            # reference; not exercised by TagSimpleHGN graphs, so not fused here.
            raise NotImplementedError("src-only node types not supported by fused kernel")
    rel_idx = tuple((nt_index[st], nt_index[dt], etypes[et]) for st, et, dt in relations)

    T = len(dst_order)
    h_arrays = [h[nt] for nt in dst_order]
    mask_arrays = [masks[r] for r in relations]
    d_out = lp["fc_w"].shape[1]
    out_shapes = tuple((a.shape[0], d_out) for a in h_arrays) * 2  # h0[t]..., new[t]...

    kern = partial(hgn_layer_kernel, num_types=T, rel_idx=rel_idx,
                   num_heads=num_heads, d_k=d_k, neg_slope=NEG_SLOPE, use_norm=use_norm)
    outs = _pcall(kern, out_shapes,
                  h_arrays + mask_arrays +
                  [lp["fc_w"], lp["fc_edge_w"], lp["edge_emb"],
                   lp["attn_l_hd"], lp["attn_r_dh"], lp["attn_e_dh"],
                   lp["ln_gamma"], lp["ln_beta"]])

    # Reproduce the PyTorch in-place dict mutation: h_layer[l][nt] now holds fc(h[nt]).
    for i, nt in enumerate(dst_order):
        h[nt] = outs[i]
    return {nt: outs[T + i] for i, nt in enumerate(dst_order)}


def l2_normalize(x):
    return _pcall(l2_normalize_kernel, (x.shape,), [x])[0]


def tag_simple_hgn_forward(params, cfg, inputs):
    num_videos = inputs["num_videos"]
    h = common_embedding(params, inputs["video_feat"], inputs["tag_feat"], inputs["tag_nids"])
    h_layer = [h]
    for l in range(cfg["num_layers"]):
        h = simple_hgn_layer(params["layers"][l], cfg["relations"], cfg["etypes"],
                             h, inputs["masks"], cfg["num_heads"], cfg["d_k"], cfg["use_norm"])
        h_layer.append(h)
    h["video"] = l2_normalize(h_layer[cfg["video_emb_layer"]]["video"][:num_videos])
    return h   # == pair_graph.ndata['h']


# ----------------------------------------------------------------------------
# parameter init + one-time kernel-ready preparation
# ----------------------------------------------------------------------------
def init_params(key, num_tags, video_in_dim, tag_in_dim, hidden_dim,
                num_layers, num_relations):
    def xavier(k, shape):
        lim = math.sqrt(6.0 / (shape[0] + shape[1]))
        return jax.random.uniform(k, shape, jnp.float32, -lim, lim)

    ks = jax.random.split(key, 3 + num_layers)
    common = {
        "tag_embed": 0.1 * jax.random.normal(ks[0], (num_tags, tag_in_dim), jnp.float32),
        "video_bn": (jnp.ones(video_in_dim), jnp.zeros(video_in_dim),
                     jnp.zeros(video_in_dim), jnp.ones(video_in_dim)),
        "video_w": xavier(ks[1], (video_in_dim, hidden_dim)),
        "video_b": jnp.zeros(hidden_dim, jnp.float32),
        "tag_bn": (jnp.ones(tag_in_dim), jnp.zeros(tag_in_dim),
                   jnp.zeros(tag_in_dim), jnp.ones(tag_in_dim)),
        "tag_w": xavier(ks[2], (tag_in_dim, hidden_dim)),
        "tag_b": jnp.zeros(hidden_dim, jnp.float32),
    }
    layers = []
    for l in range(num_layers):
        lk = jax.random.split(ks[3 + l], 6)
        layers.append({
            "fc_w": xavier(lk[0], (hidden_dim, hidden_dim)),
            "fc_edge_w": xavier(lk[1], (hidden_dim, hidden_dim)),
            "edge_emb": xavier(lk[2], (num_relations, hidden_dim)),
            "attn_l": xavier(lk[3], (1, hidden_dim)),
            "attn_r": xavier(lk[4], (1, hidden_dim)),
            "attn_e": xavier(lk[5], (1, hidden_dim)),
            "ln_gamma": jnp.ones((1, hidden_dim), jnp.float32),
            "ln_beta": jnp.zeros((1, hidden_dim), jnp.float32),
        })
    return {"common": common, "layers": layers}


def _head_block_rows(v, num_heads, d_k):
    """v: [1, H*d_k] -> [H, H*d_k] where row h holds v's head-h slice, zeros elsewhere."""
    D = v.shape[-1]
    rows = jnp.arange(num_heads)[:, None]
    cols = jnp.arange(D)[None, :] // d_k
    return jnp.where(rows == cols, jnp.broadcast_to(v, (num_heads, D)), 0.0).astype(jnp.float32)


def prepare_params(params, num_heads, d_k):
    """One-time prep: fold eval-BatchNorm into scale/shift, build per-head block
    matrices for attn_l/attn_r/attn_e so the kernels do pure matmuls."""
    ce = params["common"]

    def fold(bn):
        g, b, mean, var = bn
        inv = g / jnp.sqrt(var + BN_EPS)
        return inv[None, :], (b - mean * inv)[None, :]

    v_scale, v_shift = fold(ce["video_bn"])
    t_scale, t_shift = fold(ce["tag_bn"])
    common = dict(
        tag_embed=ce["tag_embed"],
        video_scale=v_scale, video_shift=v_shift,
        video_w=ce["video_w"], video_b=ce["video_b"][None, :],
        tag_scale=t_scale, tag_shift=t_shift,
        tag_w=ce["tag_w"], tag_b=ce["tag_b"][None, :])

    layers = []
    for lp in params["layers"]:
        layers.append(dict(
            fc_w=lp["fc_w"], fc_edge_w=lp["fc_edge_w"], edge_emb=lp["edge_emb"],
            attn_l_hd=_head_block_rows(lp["attn_l"], num_heads, d_k),        # [H, D]
            attn_r_dh=_head_block_rows(lp["attn_r"], num_heads, d_k).T,      # [D, H]
            attn_e_dh=_head_block_rows(lp["attn_e"], num_heads, d_k).T,      # [D, H]
            ln_gamma=lp["ln_gamma"], ln_beta=lp["ln_beta"]))
    return dict(common=common, layers=layers)


# ----------------------------------------------------------------------------
if __name__ == "__main__":
    # small, module-consistent shapes
    num_tags, video_in_dim, tag_in_dim, hidden_dim = 20, 64, 48, 32
    num_heads = 1                                   # TagSimpleHGN default
    N_video, N_tag = 8, 12

    relations = (("tag", "tv", "video"), ("video", "vt", "tag"))
    layer_relations = [relations, relations]        # 2 SimpleHGN layers
    etypes = {"tv": 0, "vt": 1}
    cfg = dict(num_layers=len(layer_relations), relations=relations, etypes=etypes,
               num_heads=num_heads, d_k=hidden_dim // num_heads,
               use_norm=True, video_emb_layer=0)

    key = jax.random.PRNGKey(0)
    kp, kd = jax.random.split(key)
    raw_params = init_params(kp, num_tags, video_in_dim, tag_in_dim, hidden_dim,
                             cfg["num_layers"], len(etypes))
    params = prepare_params(raw_params, cfg["num_heads"], cfg["d_k"])

    k1, k2, k3, k4, k5 = jax.random.split(kd, 5)
    video_feat = jax.random.normal(k1, (N_video, video_in_dim), jnp.float32)
    tag_feat = jax.random.normal(k2, (N_tag, tag_in_dim), jnp.float32)
    tag_nids = jax.random.randint(k3, (N_tag,), 0, num_tags)
    mask_tv = jax.random.bernoulli(k4, 0.5, (N_video, N_tag)).astype(jnp.float32)
    mask_vt = jax.random.bernoulli(k5, 0.5, (N_tag, N_video)).astype(jnp.float32)

    inputs = dict(
        video_feat=video_feat, tag_feat=tag_feat, tag_nids=tag_nids,
        masks={("tag", "tv", "video"): mask_tv, ("video", "vt", "tag"): mask_vt},
        num_videos=N_video,
    )

    out = tag_simple_hgn_forward(params, cfg, inputs)
    jax.block_until_ready(out["video"])
    jax.block_until_ready(out["tag"])

    assert out["video"].shape == (N_video, hidden_dim)
    assert out["tag"].shape == (N_tag, hidden_dim)
    assert bool(jnp.all(jnp.isfinite(out["video"])))
    assert bool(jnp.all(jnp.isfinite(out["tag"])))
    print("KERNEL_OK")
</pallas_src>

<mosaic_0001>
module attributes {stable_mosaic.version = 11 : i64} {
  func.func @common_embed_kernel(%arg0: i32, %arg1: memref<8x64xf32, #tpu.memory_space<vmem>>, %arg2: memref<1x64xf32, #tpu.memory_space<vmem>>, %arg3: memref<1x64xf32, #tpu.memory_space<vmem>>, %arg4: memref<64x32xf32, #tpu.memory_space<vmem>>, %arg5: memref<1x32xf32, #tpu.memory_space<vmem>>, %arg6: memref<12x48xf32, #tpu.memory_space<vmem>>, %arg7: memref<1x48xf32, #tpu.memory_space<vmem>>, %arg8: memref<1x48xf32, #tpu.memory_space<vmem>>, %arg9: memref<48x32xf32, #tpu.memory_space<vmem>>, %arg10: memref<1x32xf32, #tpu.memory_space<vmem>>, %arg11: memref<8x32xf32, #tpu.memory_space<vmem>>, %arg12: memref<12x32xf32, #tpu.memory_space<vmem>>) attributes {dimension_semantics = [#tpu.dimension_semantics<arbitrary>], iteration_bounds = array<i64: 1>, scalar_prefetch = 0 : i64, scratch_operands = 0 : i64, tpu.core_type = #tpu.core_type<tc>, window_params = [{pipeline_mode = #tpu.pipeline_mode<synchronous>, transform_indices = @transform_0, window_bounds = array<i64: 8, 64>}, {pipeline_mode = #tpu.pipeline_mode<synchronous>, transform_indices = @transform_1, window_bounds = array<i64: 1, 64>}, {pipeline_mode = #tpu.pipeline_mode<synchronous>, transform_indices = @transform_2, window_bounds = array<i64: 1, 64>}, {pipeline_mode = #tpu.pipeline_mode<synchronous>, transform_indices = @transform_3, window_bounds = array<i64: 64, 32>}, {pipeline_mode = #tpu.pipeline_mode<synchronous>, transform_indices = @transform_4, window_bounds = array<i64: 1, 32>}, {pipeline_mode = #tpu.pipeline_mode<synchronous>, transform_indices = @transform_5, window_bounds = array<i64: 12, 48>}, {pipeline_mode = #tpu.pipeline_mode<synchronous>, transform_indices = @transform_6, window_bounds = array<i64: 1, 48>}, {pipeline_mode = #tpu.pipeline_mode<synchronous>, transform_indices = @transform_7, window_bounds = array<i64: 1, 48>}, {pipeline_mode = #tpu.pipeline_mode<synchronous>, transform_indices = @transform_8, window_bounds = array<i64: 48, 32>}, {pipeline_mode = #tpu.pipeline_mode<synchronous>, transform_indices = @transform_9, window_bounds = array<i64: 1, 32>}, {pipeline_mode = #tpu.pipeline_mode<synchronous>, transform_indices = @transform_10, window_bounds = array<i64: 8, 32>}, {pipeline_mode = #tpu.pipeline_mode<synchronous>, transform_indices = @transform_11, window_bounds = array<i64: 12, 32>}]} {
    %c0 = arith.constant 0 : index
    %c0_0 = arith.constant 0 : index
    %0 = vector.load %arg1[%c0, %c0_0] : memref<8x64xf32, #tpu.memory_space<vmem>>, vector<8x64xf32>
    %c0_1 = arith.constant 0 : index
    %c0_2 = arith.constant 0 : index
    %1 = vector.load %arg2[%c0_1, %c0_2] : memref<1x64xf32, #tpu.memory_space<vmem>>, vector<1x64xf32>
    %2 = vector.broadcast %1 : vector<1x64xf32> to vector<8x64xf32>
    %3 = arith.mulf %0, %2 : vector<8x64xf32>
    %c0_3 = arith.constant 0 : index
    %c0_4 = arith.constant 0 : index
    %4 = vector.load %arg3[%c0_3, %c0_4] : memref<1x64xf32, #tpu.memory_space<vmem>>, vector<1x64xf32>
    %5 = vector.broadcast %4 : vector<1x64xf32> to vector<8x64xf32>
    %6 = arith.addf %3, %5 : vector<8x64xf32>
    %c0_5 = arith.constant 0 : index
    %c0_6 = arith.constant 0 : index
    %7 = vector.load %arg4[%c0_5, %c0_6] : memref<64x32xf32, #tpu.memory_space<vmem>>, vector<64x32xf32>
    %cst = arith.constant dense<0.000000e+00> : vector<8x32xf32>
    %8 = tpu.matmul %6, %7, %cst {dimension_numbers = #tpu.dot_dimension_numbers<[1], [0], [0], [1], [0, 0, 1, 1], [], []>} : vector<8x64xf32>, vector<64x32xf32>, vector<8x32xf32> -> vector<8x32xf32>
    %c0_7 = arith.constant 0 : index
    %c0_8 = arith.constant 0 : index
    %9 = vector.load %arg5[%c0_7, %c0_8] : memref<1x32xf32, #tpu.memory_space<vmem>>, vector<1x32xf32>
    %10 = vector.broadcast %9 : vector<1x32xf32> to vector<8x32xf32>
    %11 = arith.addf %8, %10 : vector<8x32xf32>
    %cst_9 = arith.constant 5.000000e-01 : f32
    %12 = vector.broadcast %cst_9 : f32 to vector<8x32xf32>
    %13 = arith.mulf %12, %11 : vector<8x32xf32>
    %cst_10 = arith.constant 0.707106769 : f32
    %14 = vector.broadcast %cst_10 : f32 to vector<8x32xf32>
    %15 = arith.mulf %11, %14 : vector<8x32xf32>
    %cst_11 = arith.constant 0.000000e+00 : f32
    %16 = vector.broadcast %cst_11 : f32 to vector<8x32xf32>
    %17 = arith.cmpf oge, %15, %16 : vector<8x32xf32>
    %cst_12 = arith.constant 1.000000e+00 : f32
    %cst_13 = arith.constant -1.000000e+00 : f32
    %18 = vector.broadcast %cst_12 : f32 to vector<8x32xf32>
    %19 = vector.broadcast %cst_13 : f32 to vector<8x32xf32>
    %20 = arith.select %17, %18, %19 : vector<8x32xi1>, vector<8x32xf32>
    %21 = math.absf %15 : vector<8x32xf32>
    %cst_14 = arith.constant 0.327591091 : f32
    %22 = vector.broadcast %cst_14 : f32 to vector<8x32xf32>
    %23 = arith.mulf %22, %21 : vector<8x32xf32>
    %cst_15 = arith.constant 1.000000e+00 : f32
    %24 = vector.broadcast %cst_15 : f32 to vector<8x32xf32>
    %25 = arith.addf %24, %23 : vector<8x32xf32>
    %cst_16 = arith.constant 1.000000e+00 : f32
    %26 = vector.broadcast %cst_16 : f32 to vector<8x32xf32>
    %27 = arith.divf %26, %25 : vector<8x32xf32>
    %cst_17 = arith.constant 1.06140542 : f32
    %28 = vector.broadcast %cst_17 : f32 to vector<8x32xf32>
    %29 = arith.mulf %28, %27 : vector<8x32xf32>
    %cst_18 = arith.constant -1.45315206 : f32
    %30 = vector.broadcast %cst_18 : f32 to vector<8x32xf32>
    %31 = arith.addf %29, %30 : vector<8x32xf32>
    %32 = arith.mulf %31, %27 : vector<8x32xf32>
    %cst_19 = arith.constant 1.42141378 : f32
    %33 = vector.broadcast %cst_19 : f32 to vector<8x32xf32>
    %34 = arith.addf %32, %33 : vector<8x32xf32>
    %35 = arith.mulf %34, %27 : vector<8x32xf32>
    %cst_20 = arith.constant -0.284496725 : f32
    %36 = vector.broadcast %cst_20 : f32 to vector<8x32xf32>
    %37 = arith.addf %35, %36 : vector<8x32xf32>
    %38 = arith.mulf %37, %27 : vector<8x32xf32>
    %cst_21 = arith.constant 0.254829586 : f32
    %39 = vector.broadcast %cst_21 : f32 to vector<8x32xf32>
    %40 = arith.addf %38, %39 : vector<8x32xf32>
    %41 = arith.mulf %40, %27 : vector<8x32xf32>
    %cst_22 = arith.constant 0.000000e+00 : f32
    %42 = vector.broadcast %cst_22 : f32 to vector<8x32xf32>
    %43 = arith.subf %42, %21 : vector<8x32xf32>
    %44 = arith.mulf %43, %21 : vector<8x32xf32>
    %45 = math.exp %44 : vector<8x32xf32>
    %46 = arith.mulf %41, %45 : vector<8x32xf32>
    %cst_23 = arith.constant 1.000000e+00 : f32
    %47 = vector.broadcast %cst_23 : f32 to vector<8x32xf32>
    %48 = arith.subf %47, %46 : vector<8x32xf32>
    %49 = arith.mulf %20, %48 : vector<8x32xf32>
    %cst_24 = arith.constant 1.000000e+00 : f32
    %50 = vector.broadcast %cst_24 : f32 to vector<8x32xf32>
    %51 = arith.addf %50, %49 : vector<8x32xf32>
    %52 = arith.mulf %13, %51 : vector<8x32xf32>
    %c0_25 = arith.constant 0 : index
    %c0_26 = arith.constant 0 : index
    %53 = vector.load %arg11[%c0_25, %c0_26] : memref<8x32xf32, #tpu.memory_space<vmem>>, vector<8x32xf32>
    tpu.vector_store %arg11[%c0_25, %c0_26], %52 {strides = array<i32>} : memref<8x32xf32, #tpu.memory_space<vmem>>, vector<8x32xf32>,
    %c0_27 = arith.constant 0 : index
    %c0_28 = arith.constant 0 : index
    %54 = vector.load %arg6[%c0_27, %c0_28] : memref<12x48xf32, #tpu.memory_space<vmem>>, vector<12x48xf32>
    %c0_29 = arith.constant 0 : index
    %c0_30 = arith.constant 0 : index
    %55 = vector.load %arg7[%c0_29, %c0_30] : memref<1x48xf32, #tpu.memory_space<vmem>>, vector<1x48xf32>
    %56 = vector.broadcast %55 : vector<1x48xf32> to vector<12x48xf32>
    %57 = arith.mulf %54, %56 : vector<12x48xf32>
    %c0_31 = arith.constant 0 : index
    %c0_32 = arith.constant 0 : index
    %58 = vector.load %arg8[%c0_31, %c0_32] : memref<1x48xf32, #tpu.memory_space<vmem>>, vector<1x48xf32>
    %59 = vector.broadcast %58 : vector<1x48xf32> to vector<12x48xf32>
    %60 = arith.addf %57, %59 : vector<12x48xf32>
    %c0_33 = arith.constant 0 : index
    %c0_34 = arith.constant 0 : index
    %61 = vector.load %arg9[%c0_33, %c0_34] : memref<48x32xf32, #tpu.memory_space<vmem>>, vector<48x32xf32>
    %cst_35 = arith.constant dense<0.000000e+00> : vector<12x32xf32>
    %62 = tpu.matmul %60, %61, %cst_35 {dimension_numbers = #tpu.dot_dimension_numbers<[1], [0], [0], [1], [0, 0, 1, 1], [], []>} : vector<12x48xf32>, vector<48x32xf32>, vector<12x32xf32> -> vector<12x32xf32>
    %c0_36 = arith.constant 0 : index
    %c0_37 = arith.constant 0 : index
    %63 = vector.load %arg10[%c0_36, %c0_37] : memref<1x32xf32, #tpu.memory_space<vmem>>, vector<1x32xf32>
    %64 = vector.broadcast %63 : vector<1x32xf32> to vector<12x32xf32>
    %65 = arith.addf %62, %64 : vector<12x32xf32>
    %cst_38 = arith.constant 5.000000e-01 : f32
    %66 = vector.broadcast %cst_38 : f32 to vector<12x32xf32>
    %67 = arith.mulf %66, %65 : vector<12x32xf32>
    %cst_39 = arith.constant 0.707106769 : f32
    %68 = vector.broadcast %cst_39 : f32 to vector<12x32xf32>
    %69 = arith.mulf %65, %68 : vector<12x32xf32>
    %cst_40 = arith.constant 0.000000e+00 : f32
    %70 = vector.broadcast %cst_40 : f32 to vector<12x32xf32>
    %71 = arith.cmpf oge, %69, %70 : vector<12x32xf32>
    %cst_41 = arith.constant 1.000000e+00 : f32
    %cst_42 = arith.constant -1.000000e+00 : f32
    %72 = vector.broadcast %cst_41 : f32 to vector<12x32xf32>
    %73 = vector.broadcast %cst_42 : f32 to vector<12x32xf32>
    %74 = arith.select %71, %72, %73 : vector<12x32xi1>, vector<12x32xf32>
    %75 = math.absf %69 : vector<12x32xf32>
    %cst_43 = arith.constant 0.327591091 : f32
    %76 = vector.broadcast %cst_43 : f32 to vector<12x32xf32>
    %77 = arith.mulf %76, %75 : vector<12x32xf32>
    %cst_44 = arith.constant 1.000000e+00 : f32
    %78 = vector.broadcast %cst_44 : f32 to vector<12x32xf32>
    %79 = arith.addf %78, %77 : vector<12x32xf32>
    %cst_45 = arith.constant 1.000000e+00 : f32
    %80 = vector.broadcast %cst_45 : f32 to vector<12x32xf32>
    %81 = arith.divf %80, %79 : vector<12x32xf32>
    %cst_46 = arith.constant 1.06140542 : f32
    %82 = vector.broadcast %cst_46 : f32 to vector<12x32xf32>
    %83 = arith.mulf %82, %81 : vector<12x32xf32>
    %cst_47 = arith.constant -1.45315206 : f32
    %84 = vector.broadcast %cst_47 : f32 to vector<12x32xf32>
    %85 = arith.addf %83, %84 : vector<12x32xf32>
    %86 = arith.mulf %85, %81 : vector<12x32xf32>
    %cst_48 = arith.constant 1.42141378 : f32
    %87 = vector.broadcast %cst_48 : f32 to vector<12x32xf32>
    %88 = arith.addf %86, %87 : vector<12x32xf32>
    %89 = arith.mulf %88, %81 : vector<12x32xf32>
    %cst_49 = arith.constant -0.284496725 : f32
    %90 = vector.broadcast %cst_49 : f32 to vector<12x32xf32>
    %91 = arith.addf %89, %90 : vector<12x32xf32>
    %92 = arith.mulf %91, %81 : vector<12x32xf32>
    %cst_50 = arith.constant 0.254829586 : f32
    %93 = vector.broadcast %cst_50 : f32 to vector<12x32xf32>
    %94 = arith.addf %92, %93 : vector<12x32xf32>
    %95 = arith.mulf %94, %81 : vector<12x32xf32>
    %cst_51 = arith.constant 0.000000e+00 : f32
    %96 = vector.broadcast %cst_51 : f32 to vector<12x32xf32>
    %97 = arith.subf %96, %75 : vector<12x32xf32>
    %98 = arith.mulf %97, %75 : vector<12x32xf32>
    %99 = math.exp %98 : vector<12x32xf32>
    %100 = arith.mulf %95, %99 : vector<12x32xf32>
    %cst_52 = arith.constant 1.000000e+00 : f32
    %101 = vector.broadcast %cst_52 : f32 to vector<12x32xf32>
    %102 = arith.subf %101, %100 : vector<12x32xf32>
    %103 = arith.mulf %74, %102 : vector<12x32xf32>
    %cst_53 = arith.constant 1.000000e+00 : f32
    %104 = vector.broadcast %cst_53 : f32 to vector<12x32xf32>
    %105 = arith.addf %104, %103 : vector<12x32xf32>
    %106 = arith.mulf %67, %105 : vector<12x32xf32>
    %c0_54 = arith.constant 0 : index
    %c0_55 = arith.constant 0 : index
    %107 = vector.load %arg12[%c0_54, %c0_55] : memref<12x32xf32, #tpu.memory_space<vmem>>, vector<12x32xf32>
    tpu.vector_store %arg12[%c0_54, %c0_55], %106 {strides = array<i32>} : memref<12x32xf32, #tpu.memory_space<vmem>>, vector<12x32xf32>,
    return
  }
  func.func @transform_0(%arg0: i32) -> (i32, i32) {
    %c0_i32 = arith.constant 0 : i32
    %c0_i32_0 = arith.constant 0 : i32
    %c0_i32_1 = arith.constant 0 : i32
    return %c0_i32, %c0_i32_0 : i32, i32
  }
  func.func @transform_1(%arg0: i32) -> (i32, i32) {
    %c0_i32 = arith.constant 0 : i32
    %c0_i32_0 = arith.constant 0 : i32
    %c0_i32_1 = arith.constant 0 : i32
    return %c0_i32, %c0_i32_0 : i32, i32
  }
  func.func @transform_2(%arg0: i32) -> (i32, i32) {
    %c0_i32 = arith.constant 0 : i32
    %c0_i32_0 = arith.constant 0 : i32
    %c0_i32_1 = arith.constant 0 : i32
    return %c0_i32, %c0_i32_0 : i32, i32
  }
  func.func @transform_3(%arg0: i32) -> (i32, i32) {
    %c0_i32 = arith.constant 0 : i32
    %c0_i32_0 = arith.constant 0 : i32
    %c0_i32_1 = arith.constant 0 : i32
    return %c0_i32, %c0_i32_0 : i32, i32
  }
  func.func @transform_4(%arg0: i32) -> (i32, i32) {
    %c0_i32 = arith.constant 0 : i32
    %c0_i32_0 = arith.constant 0 : i32
    %c0_i32_1 = arith.constant 0 : i32
    return %c0_i32, %c0_i32_0 : i32, i32
  }
  func.func @transform_5(%arg0: i32) -> (i32, i32) {
    %c0_i32 = arith.constant 0 : i32
    %c0_i32_0 = arith.constant 0 : i32
    %c0_i32_1 = arith.constant 0 : i32
    return %c0_i32, %c0_i32_0 : i32, i32
  }
  func.func @transform_6(%arg0: i32) -> (i32, i32) {
    %c0_i32 = arith.constant 0 : i32
    %c0_i32_0 = arith.constant 0 : i32
    %c0_i32_1 = arith.constant 0 : i32
    return %c0_i32, %c0_i32_0 : i32, i32
  }
  func.func @transform_7(%arg0: i32) -> (i32, i32) {
    %c0_i32 = arith.constant 0 : i32
    %c0_i32_0 = arith.constant 0 : i32
    %c0_i32_1 = arith.constant 0 : i32
    return %c0_i32, %c0_i32_0 : i32, i32
  }
  func.func @transform_8(%arg0: i32) -> (i32, i32) {
    %c0_i32 = arith.constant 0 : i32
    %c0_i32_0 = arith.constant 0 : i32
    %c0_i32_1 = arith.constant 0 : i32
    return %c0_i32, %c0_i32_0 : i32, i32
  }
  func.func @transform_9(%arg0: i32) -> (i32, i32) {
    %c0_i32 = arith.constant 0 : i32
    %c0_i32_0 = arith.constant 0 : i32
    %c0_i32_1 = arith.constant 0 : i32
    return %c0_i32, %c0_i32_0 : i32, i32
  }
  func.func @transform_10(%arg0: i32) -> (i32, i32) {
    %c0_i32 = arith.constant 0 : i32
    %c0_i32_0 = arith.constant 0 : i32
    %c0_i32_1 = arith.constant 0 : i32
    return %c0_i32, %c0_i32_0 : i32, i32
  }
  func.func @transform_11(%arg0: i32) -> (i32, i32) {
    %c0_i32 = arith.constant 0 : i32
    %c0_i32_0 = arith.constant 0 : i32
    %c0_i32_1 = arith.constant 0 : i32
    return %c0_i32, %c0_i32_0 : i32, i32
  }
}

</mosaic_0001>

<llo_original>
// kernel: tpu_custom_call.1
$region0: #{tpu_custom_call.1}
  #allocation0 [shape = 'u32[]', space=smem, size = 0x4, offset = 0x4, fixed_abs, tag = 'smem constant byte address 0x4 - core index']
  #allocation1 [shape = 'u32[144,128]{1,0:T(1,128)}', space=vmem, size = 0x12000, scoped, tag = 'internal scratch']
  %s0 = inlined_call_operand.vmem [shape: f32[8,64], index: 0, kind: input, shape index: {}]
  %s1 = inlined_call_operand.vmem [shape: f32[1,64], index: 1, kind: input, shape index: {}]
  %s2 = inlined_call_operand.vmem [shape: f32[1,64], index: 2, kind: input, shape index: {}]
  %s3 = inlined_call_operand.vmem [shape: f32[64,32], index: 3, kind: input, shape index: {}]
  %s4 = inlined_call_operand.vmem [shape: f32[1,32], index: 4, kind: input, shape index: {}]
  %s5 = inlined_call_operand.vmem [shape: f32[12,48], index: 5, kind: input, shape index: {}]
  %s6 = inlined_call_operand.vmem [shape: f32[1,48], index: 6, kind: input, shape index: {}]
  %s7 = inlined_call_operand.vmem [shape: f32[1,48], index: 7, kind: input, shape index: {}]
  %s8 = inlined_call_operand.vmem [shape: f32[48,32], index: 8, kind: input, shape index: {}]
  %s9 = inlined_call_operand.vmem [shape: f32[1,32], index: 9, kind: input, shape index: {}]
  %s10 = inlined_call_operand.hbm [shape: f32[8,32], index: 10, kind: output, shape index: {0}]
  %s11 = inlined_call_operand.hbm [shape: f32[12,32], index: 11, kind: output, shape index: {1}]
  %12 = xla_tuple %s10, %s11
  %s13 = sld [smem:[#allocation0]]
  $region58: #{tpu_custom_call.1} parent=0
    _
  %s15 = ssub.s32 1, %s13
  %s16 = scalar_select 0, %s15, %s13
  $region1: #{tpu_custom_call.1} parent=0
    #allocation2 [shape = 'u8[4096]{0}', space=vmem, size = 0x1000, scoped, tag = 'output window, operand 0, single buffered']
    #allocation3 [shape = 's32[1]{0}', space=sflag, size = 0x4, scoped, tag = 'scoped memory for tpu_custom_call.1']
    #allocation4 [shape = 'u8[8192]{0}', space=vmem, size = 0x2000, scoped, tag = 'output window, operand 1, single buffered']
    #allocation5 [shape = 's32[1]{0}', space=sflag, size = 0x4, scoped, tag = 'scoped memory for tpu_custom_call.1']
    %17 = vsyncpa [#allocation3], 0
    %18 = vsyncpa [#allocation5], 0
    // Predicated region
    $region2: #{tpu_custom_call.1} parent=1 // pred_check
      _
    $region3: #{tpu_custom_call.1} parent=1 // pred_check_branch
      %20 = sbr.rel (0) target = $region5
    $region4: #{tpu_custom_call.1} parent=1 // pred_region
      _
    $region5: #{tpu_custom_call.1} parent=1 // pred_fallthru
      _
    // Predicated region
    $region6: #{tpu_custom_call.1} parent=1 // pred_check
      _
    $region7: #{tpu_custom_call.1} parent=1 // pred_check_branch
      %22 = sbr.rel (0) target = $region9
    $region8: #{tpu_custom_call.1} parent=1 // pred_region
      _
    $region9: #{tpu_custom_call.1} parent=1 // pred_fallthru
      _
    // Predicated region
    $region10: #{tpu_custom_call.1} parent=1 // pred_check
      _
    $region11: #{tpu_custom_call.1} parent=1 // pred_check_branch
      %24 = sbr.rel (0) target = $region13
    $region12: #{tpu_custom_call.1} parent=1 // pred_region
      _
    $region13: #{tpu_custom_call.1} parent=1 // pred_fallthru
      _
    // Predicated region
    $region14: #{tpu_custom_call.1} parent=1 // pred_check
      _
    $region15: #{tpu_custom_call.1} parent=1 // pred_check_branch
      %26 = sbr.rel (0) target = $region17
    $region16: #{tpu_custom_call.1} parent=1 // pred_region
      _
    $region17: #{tpu_custom_call.1} parent=1 // pred_fallthru
      _
    // Predicated region
    $region18: #{tpu_custom_call.1} parent=1 // pred_check
      _
    $region19: #{tpu_custom_call.1} parent=1 // pred_check_branch
      %28 = sbr.rel (0) target = $region21
    $region20: #{tpu_custom_call.1} parent=1 // pred_region
      _
    $region21: #{tpu_custom_call.1} parent=1 // pred_fallthru
      _
    // Predicated region
    $region22: #{tpu_custom_call.1} parent=1 // pred_check
      _
    $region23: #{tpu_custom_call.1} parent=1 // pred_check_branch
      %30 = sbr.rel (0) target = $region25
    $region24: #{tpu_custom_call.1} parent=1 // pred_region
      _
    $region25: #{tpu_custom_call.1} parent=1 // pred_fallthru
      _
    // Predicated region
    $region26: #{tpu_custom_call.1} parent=1 // pred_check
      _
    $region27: #{tpu_custom_call.1} parent=1 // pred_check_branch
      %32 = sbr.rel (0) target = $region29
    $region28: #{tpu_custom_call.1} parent=1 // pred_region
      _
    $region29: #{tpu_custom_call.1} parent=1 // pred_fallthru
      _
    // Predicated region
    $region30: #{tpu_custom_call.1} parent=1 // pred_check
      _
    $region31: #{tpu_custom_call.1} parent=1 // pred_check_branch
      %34 = sbr.rel (0) target = $region33
    $region32: #{tpu_custom_call.1} parent=1 // pred_region
      _
    $region33: #{tpu_custom_call.1} parent=1 // pred_fallthru
      _
    // Predicated region
    $region34: #{tpu_custom_call.1} parent=1 // pred_check
      _
    $region35: #{tpu_custom_call.1} parent=1 // pred_check_branch
      %36 = sbr.rel (0) target = $region37
    $region36: #{tpu_custom_call.1} parent=1 // pred_region
      _
    $region37: #{tpu_custom_call.1} parent=1 // pred_fallthru
      _
    // Predicated region
    $region38: #{tpu_custom_call.1} parent=1 // pred_check
      _
    $region39: #{tpu_custom_call.1} parent=1 // pred_check_branch
      %38 = sbr.rel (0) target = $region41
    $region40: #{tpu_custom_call.1} parent=1 // pred_region
      _
    $region41: #{tpu_custom_call.1} parent=1 // pred_fallthru
      _
    %v39 = vld [vmem:[%s0] sm:$0xff]
    %v40 = vld [vmem:[%s1] sm:$0x1]
    %v42 = vlaneseq
    %v43 = vshrl.u32 %v42, 7
    %v44 = vsub.s32 0, %v43
    %v45 = vrot.slane %v40, %v44
    %v47 = vmul.f32 %v39, %v45
    %v48 = vld [vmem:[%s2] sm:$0x1]
    %v50 = vlaneseq
    %v51 = vshrl.u32 %v50, 7
    %v52 = vsub.s32 0, %v51
    %v53 = vrot.slane %v48, %v52
    %v55 = vadd.f32 %v47, %v53
    %v56 = vld [vmem:[%s3] sm:$0xff]
    %v57 = vld [vmem:[%s3 + $0x8] sm:$0xff]
    %v58 = vld [vmem:[%s3 + $0x10] sm:$0xff]
    %v59 = vld [vmem:[%s3 + $0x18] sm:$0xff]
    %v60 = vld [vmem:[%s3 + $0x20] sm:$0xff]
    %v61 = vld [vmem:[%s3 + $0x28] sm:$0xff]
    %v62 = vld [vmem:[%s3 + $0x30] sm:$0xff]
    %v63 = vld [vmem:[%s3 + $0x38] sm:$0xff]
    %v64 = vld [vmem:[%s4] sm:$0x1]
    %v66 = vlaneseq
    %v67 = vshrl.u32 %v66, 7
    %v68 = vsub.s32 0, %v67
    %v69 = vrot.slane %v64, %v68
    %vm71 = vcmask 523264
    %v73 = vsel %vm71, %v55, 0
    %75 = vmatprep.subr.mxu0 0.0
    %76 = vmatpush1.msra.mxu0 0.0
    %77 = vmatprep.subr.mxu0 0.0
    %78 = vmatpush1.msra.mxu0 0.0
    %79 = vmatprep.subr.mxu0 0.0
    %80 = vmatpush1.msra.mxu0 0.0
    %81 = vmatprep.subr.mxu0 0.0
    %82 = vmatpush1.msra.mxu0 0.0
    %83 = vmatprep.subr.mxu0 0.0
    %84 = vmatpush1.msra.mxu0 0.0
    %85 = vmatprep.subr.mxu0 0.0
    %86 = vmatpush1.msra.mxu0 0.0
    %87 = vmatprep.subr.mxu0 0.0
    %88 = vmatpush1.msra.mxu0 0.0
    %89 = vmatprep.subr.mxu0 0.0
    %90 = vmatpush1.msra.mxu0 0.0
    %91 = vmatprep.subr.mxu0 0.0
    %92 = vmatpush1.msra.mxu0 %v63
    %93 = vmatprep.subr.mxu0 0.0
    %94 = vmatpush1.msra.mxu0 %v62
    %95 = vmatprep.subr.mxu0 0.0
    %96 = vmatpush1.msra.mxu0 %v61
    %97 = vmatprep.subr.mxu0 0.0
    %98 = vmatpush1.msra.mxu0 %v60
    %99 = vmatprep.subr.mxu0 0.0
    %100 = vmatpush1.msra.mxu0 %v59
    %101 = vmatprep.subr.mxu0 0.0
    %102 = vmatpush1.msra.mxu0 %v58
    %103 = vmatprep.subr.mxu0 0.0
    %104 = vmatpush1.msra.mxu0 %v57
    %105 = vmatprep.subr.mxu0 0.0
    %106 = vmatpush1.msra.mxu0 %v56
    %107 = vmatprep.subr.mxu0 0.0
    %108 = vmatpush2.msra.mxu0 0.0
    %109 = vmatprep.subr.mxu0 0.0
    %110 = vmatpush2.msra.mxu0 0.0
    %111 = vmatprep.subr.mxu0 0.0
    %112 = vmatpush2.msra.mxu0 0.0
    %113 = vmatprep.subr.mxu0 0.0
    %114 = vmatpush2.msra.mxu0 0.0
    %115 = vmatprep.subr.mxu0 0.0
    %116 = vmatpush2.msra.mxu0 0.0
    %117 = vmatprep.subr.mxu0 0.0
    %118 = vmatpush2.msra.mxu0 0.0
    %119 = vmatprep.subr.mxu0 0.0
    %120 = vmatpush2.msra.mxu0 0.0
    %121 = vmatprep.subr.mxu0 0.0
    %122 = vmatpush2.msra.mxu0 0.0
    %123 = vmatprep.subr.mxu0 0.0
    %124 = vmatpush2.msra.mxu0 0.0
    %125 = vmatprep.subr.mxu0 0.0
    %126 = vmatpush2.msra.mxu0 0.0
    %127 = vmatprep.subr.mxu0 0.0
    %128 = vmatpush2.msra.mxu0 0.0
    %129 = vmatprep.subr.mxu0 0.0
    %130 = vmatpush2.msra.mxu0 0.0
    %131 = vmatprep.subr.mxu0 0.0
    %132 = vmatpush2.msra.mxu0 0.0
    %133 = vmatprep.subr.mxu0 0.0
    %134 = vmatpush2.msra.mxu0 0.0
    %135 = vmatprep.subr.mxu0 0.0
    %136 = vmatpush2.msra.mxu0 0.0
    %137 = vmatprep.subr.mxu0 0.0
    %138 = vmatpush2.msra.mxu0 0.0
    %139 = vmatprep.mubr.f32.mxu0 0.0
    %140 = vmatmul.mubr.f32.gmra.mxu0 %v73
    %v141 = vpop.f32.mrf.mxu0
    %v142 = vadd.f32 %v69, %v141
    %v143 = vpop.f32.mrf.mxu0
    %144 = vdwg.mxu0
    %v145 = vmul.f32 %v142, 0.5
    %v146 = vmul.f32 %v142, 0.70710677
    %vm147 = vcmp.ge.f32.partialorder %v146, 0.0
    %v148 = vsel %vm147, 1.0, -1.0
    %v149 = vand.u32 2147483647, %v146
    %v150 = vmul.f32 %v149, 0.3275911
    %v151 = vadd.f32 %v150, 1.0
    %v152 = vrcp.pop %v151
    %v153 = vmul.f32 1.0, %v152
    %v154 = vmul.f32 %v153, 1.0614054
    %v155 = vadd.f32 %v154, -1.4531521
    %v156 = vmul.f32 %v155, %v153
    %v157 = vadd.f32 %v156, 1.4214138
    %v158 = vmul.f32 %v157, %v153
    %v159 = vadd.f32 %v158, -0.28449672
    %v160 = vmul.f32 %v159, %v153
    %v161 = vadd.f32 %v160, 0.2548296
    %v162 = vmul.f32 %v161, %v153
    %v163 = vsub.f32 0.0, %v149
    %v164 = vmul.f32 %v163, %v149
    %v165 = vmul.f32 %v164, 1.442695
    %v166 = vpow.pop %v165
    %v167 = vmul.f32 %v162, %v166
    %v168 = vsub.f32 1.0, %v167
    %v169 = vmul.f32 %v148, %v168
    %v170 = vadd.f32 %v169, 1.0
    %v171 = vmul.f32 %v145, %v170
    %vm172 = vcmask 261120
    %173 = vst.msk [vmem:[#allocation2] sm:$0xff] %vm172, %v171
    %v174 = vld [vmem:[%s5] sm:$0xff]
    %v175 = vld [vmem:[%s5 + $0x8] sm:$0xf]
    %v176 = vld [vmem:[%s6] sm:$0x1]
    %v178 = vlaneseq
    %v179 = vshrl.u32 %v178, 7
    %v180 = vsub.s32 0, %v179
    %v181 = vrot.slane %v176, %v180
    %v183 = vmul.f32 %v174, %v181
    %v184 = vmul.f32 %v175, %v181
    %v185 = vld [vmem:[%s7] sm:$0x1]
    %v187 = vlaneseq
    %v188 = vshrl.u32 %v187, 7
    %v189 = vsub.s32 0, %v188
    %v190 = vrot.slane %v185, %v189
    %v192 = vadd.f32 %v183, %v190
    %v193 = vadd.f32 %v184, %v190
    %v194 = vld [vmem:[%s8] sm:$0xff]
    %v195 = vld [vmem:[%s8 + $0x8] sm:$0xff]
    %v196 = vld [vmem:[%s8 + $0x10] sm:$0xff]
    %v197 = vld [vmem:[%s8 + $0x18] sm:$0xff]
    %v198 = vld [vmem:[%s8 + $0x20] sm:$0xff]
    %v199 = vld [vmem:[%s8 + $0x28] sm:$0xff]
    %v200 = vld [vmem:[%s9] sm:$0x1]
    %v202 = vlaneseq
    %v203 = vshrl.u32 %v202, 7
    %v204 = vsub.s32 0, %v203
    %v205 = vrot.slane %v200, %v204
    %vm207 = vcmask 392192
    %v209 = vsel %vm207, %v192, 0
    %v212 = vsel %vm207, %v193, 0
    %214 = vmatprep.subr.mxu0 0.0
    %215 = vmatpush1.msra.mxu0 0.0
    %216 = vmatprep.subr.mxu0 0.0
    %217 = vmatpush1.msra.mxu0 0.0
    %218 = vmatprep.subr.mxu0 0.0
    %219 = vmatpush1.msra.mxu0 0.0
    %220 = vmatprep.subr.mxu0 0.0
    %221 = vmatpush1.msra.mxu0 0.0
    %222 = vmatprep.subr.mxu0 0.0
    %223 = vmatpush1.msra.mxu0 0.0
    %224 = vmatprep.subr.mxu0 0.0
    %225 = vmatpush1.msra.mxu0 0.0
    %226 = vmatprep.subr.mxu0 0.0
    %227 = vmatpush1.msra.mxu0 0.0
    %228 = vmatprep.subr.mxu0 0.0
    %229 = vmatpush1.msra.mxu0 0.0
    %230 = vmatprep.subr.mxu0 0.0
    %231 = vmatpush1.msra.mxu0 0.0
    %232 = vmatprep.subr.mxu0 0.0
    %233 = vmatpush1.msra.mxu0 0.0
    %234 = vmatprep.subr.mxu0 0.0
    %235 = vmatpush1.msra.mxu0 %v199
    %236 = vmatprep.subr.mxu0 0.0
    %237 = vmatpush1.msra.mxu0 %v198
    %238 = vmatprep.subr.mxu0 0.0
    %239 = vmatpush1.msra.mxu0 %v197
    %240 = vmatprep.subr.mxu0 0.0
    %241 = vmatpush1.msra.mxu0 %v196
    %242 = vmatprep.subr.mxu0 0.0
    %243 = vmatpush1.msra.mxu0 %v195
    %244 = vmatprep.subr.mxu0 0.0
    %245 = vmatpush1.msra.mxu0 %v194
    %246 = vmatprep.subr.mxu0 0.0
    %247 = vmatpush2.msra.mxu0 0.0
    %248 = vmatprep.subr.mxu0 0.0
    %249 = vmatpush2.msra.mxu0 0.0
    %250 = vmatprep.subr.mxu0 0.0
    %251 = vmatpush2.msra.mxu0 0.0
    %252 = vmatprep.subr.mxu0 0.0
    %253 = vmatpush2.msra.mxu0 0.0
    %254 = vmatprep.subr.mxu0 0.0
    %255 = vmatpush2.msra.mxu0 0.0
    %256 = vmatprep.subr.mxu0 0.0
    %257 = vmatpush2.msra.mxu0 0.0
    %258 = vmatprep.subr.mxu0 0.0
    %259 = vmatpush2.msra.mxu0 0.0
    %260 = vmatprep.subr.mxu0 0.0
    %261 = vmatpush2.msra.mxu0 0.0
    %262 = vmatprep.subr.mxu0 0.0
    %263 = vmatpush2.msra.mxu0 0.0
    %264 = vmatprep.subr.mxu0 0.0
    %265 = vmatpush2.msra.mxu0 0.0
    %266 = vmatprep.subr.mxu0 0.0
    %267 = vmatpush2.msra.mxu0 0.0
    %268 = vmatprep.subr.mxu0 0.0
    %269 = vmatpush2.msra.mxu0 0.0
    %270 = vmatprep.subr.mxu0 0.0
    %271 = vmatpush2.msra.mxu0 0.0
    %272 = vmatprep.subr.mxu0 0.0
    %273 = vmatpush2.msra.mxu0 0.0
    %274 = vmatprep.subr.mxu0 0.0
    %275 = vmatpush2.msra.mxu0 0.0
    %276 = vmatprep.subr.mxu0 0.0
    %277 = vmatpush2.msra.mxu0 0.0
    %278 = vmatprep.mubr.f32.mxu0 0.0
    %279 = vmatmul.mubr.f32.gmra.mxu0 %v209
    %v280 = vpop.f32.mrf.mxu0
    %v281 = vadd.f32 %v205, %v280
    %v282 = vpop.f32.mrf.mxu0
    %283 = vmatprep.mubr.f32.mxu0 0.0
    %284 = vmatmul.mubr.f32.gmra.mxu0 %v212
    %v285 = vpop.f32.mrf.mxu0
    %v286 = vadd.f32 %v205, %v285
    %v287 = vpop.f32.mrf.mxu0
    %288 = vdwg.mxu0
    %v289 = vmul.f32 %v281, 0.5
    %v290 = vmul.f32 %v286, 0.5
    %v291 = vmul.f32 %v281, 0.70710677
    %v292 = vmul.f32 %v286, 0.70710677
    %vm293 = vcmp.ge.f32.partialorder %v291, 0.0
    %vm294 = vcmp.ge.f32.partialorder %v292, 0.0
    %v295 = vsel %vm293, 1.0, -1.0
    %v296 = vsel %vm294, 1.0, -1.0
    %v297 = vand.u32 2147483647, %v291
    %v298 = vand.u32 2147483647, %v292
    %v299 = vmul.f32 %v297, 0.3275911
    %v300 = vmul.f32 %v298, 0.3275911
    %v301 = vadd.f32 %v299, 1.0
    %v302 = vadd.f32 %v300, 1.0
    %v303 = vrcp.pop %v301
    %v304 = vmul.f32 1.0, %v303
    %v305 = vrcp.pop %v302
    %v306 = vmul.f32 1.0, %v305
    %v307 = vmul.f32 %v304, 1.0614054
    %v308 = vmul.f32 %v306, 1.0614054
    %v309 = vadd.f32 %v307, -1.4531521
    %v310 = vadd.f32 %v308, -1.4531521
    %v311 = vmul.f32 %v309, %v304
    %v312 = vmul.f32 %v310, %v306
    %v313 = vadd.f32 %v311, 1.4214138
    %v314 = vadd.f32 %v312, 1.4214138
    %v315 = vmul.f32 %v313, %v304
    %v316 = vmul.f32 %v314, %v306
    %v317 = vadd.f32 %v315, -0.28449672
    %v318 = vadd.f32 %v316, -0.28449672
    %v319 = vmul.f32 %v317, %v304
    %v320 = vmul.f32 %v318, %v306
    %v321 = vadd.f32 %v319, 0.2548296
    %v322 = vadd.f32 %v320, 0.2548296
    %v323 = vmul.f32 %v321, %v304
    %v324 = vmul.f32 %v322, %v306
    %v325 = vsub.f32 0.0, %v297
    %v326 = vsub.f32 0.0, %v298
    %v327 = vmul.f32 %v325, %v297
    %v328 = vmul.f32 %v326, %v298
    %v329 = vmul.f32 %v327, 1.442695
    %v330 = vpow.pop %v329
    %v331 = vmul.f32 %v328, 1.442695
    %v332 = vpow.pop %v331
    %v333 = vmul.f32 %v323, %v330
    %v334 = vmul.f32 %v324, %v332
    %v335 = vsub.f32 1.0, %v333
    %v336 = vsub.f32 1.0, %v334
    %v337 = vmul.f32 %v295, %v335
    %v338 = vmul.f32 %v296, %v336
    %v339 = vadd.f32 %v337, 1.0
    %v340 = vadd.f32 %v338, 1.0
    %v341 = vmul.f32 %v289, %v339
    %v342 = vmul.f32 %v290, %v340
    %343 = vst.msk [vmem:[#allocation4] sm:$0xff] %vm172, %v341
    %vm344 = vcmask 257024
    %345 = vst.msk [vmem:[#allocation4 + $0x8] sm:$0xf] %vm344, %v342
    // Predicated region
    $region42: #{tpu_custom_call.1} parent=1 // pred_check
      _
    $region43: #{tpu_custom_call.1} parent=1 // pred_check_branch
      %347 = sbr.rel (0) target = $region45
    $region44: #{tpu_custom_call.1} parent=1 // pred_region
      %s349 = ssub.s32 128, 128
      %350 = vsyncadd [#allocation3], %s349
      %s352 = sshll.u32 [#allocation2], 4
      %s353 = int_to_ptr.vmem [resolvable:$true] %s352
      %355 = dma.vmem_to_hbm [thread:$0]  %s353, 128, %s10, [#allocation3]
    $region45: #{tpu_custom_call.1} parent=1 // pred_fallthru
      _
    // Predicated region
    $region46: #{tpu_custom_call.1} parent=1 // pred_check
      _
    $region47: #{tpu_custom_call.1} parent=1 // pred_check_branch
      %357 = sbr.rel (0) target = $region49
    $region48: #{tpu_custom_call.1} parent=1 // pred_region
      %s359 = ssub.s32 256, 256
      %360 = vsyncadd [#allocation5], %s359
      %s361 = sshll.u32 [#allocation4], 4
      %s362 = int_to_ptr.vmem [resolvable:$true] %s361
      %367 = dma.vmem_to_hbm [thread:$0]  %s362, 256, %s11, [#allocation5], 128, 128, 8
    $region49: #{tpu_custom_call.1} parent=1 // pred_fallthru
      _
    // Predicated region
    $region50: #{tpu_custom_call.1} parent=1 // pred_check
      _
    $region51: #{tpu_custom_call.1} parent=1 // pred_check_branch
      %369 = sbr.rel (0) target = $region53
    $region52: #{tpu_custom_call.1} parent=1 // pred_region
      %370 = dma.done [#allocation3], 128
    $region53: #{tpu_custom_call.1} parent=1 // pred_fallthru
      _
    // Predicated region
    $region54: #{tpu_custom_call.1} parent=1 // pred_check
      _
    $region55: #{tpu_custom_call.1} parent=1 // pred_check_branch
      %372 = sbr.rel (0) target = $region57
    $region56: #{tpu_custom_call.1} parent=1 // pred_region
      %373 = dma.done [#allocation5], 256
    $region57: #{tpu_custom_call.1} parent=1 // pred_fallthru
      _
    %374 = vsyncpa [#allocation3], 1
    %375 = vsyncpa [#allocation5], 1

</llo_original>
